<compile_context>
chip_gen: v7x
topology: tpu7x:2x2x1
jax: 0.10.0
libtpu: 0.0.40
codegen_flags: <defaults>
</compile_context>

<pallas_src>
import jax
import jax.numpy as jnp
from jax.experimental import pallas as pl
from jax.experimental.pallas import tpu as pltpu


_FEATURE_CHUNK = 512          # lane-aligned feature chunk for the in-kernel reduce
_TARGET_TILE_BYTES = 4 << 20  # aim for ~4 MiB x tiles (>=1 MiB -> 85%+ of HBM roofline)


def _round_up(n, m):
    return ((n + m - 1) // m) * m


def _round_down(n, m):
    return (n // m) * m


def _vmem_budget_bytes():
    """Per-generation VMEM budget with headroom below physical capacity."""
    try:
        phys = pltpu.get_tpu_info().vmem_capacity_bytes
    except Exception:
        phys = 64 << 20                      # conservative default: v7x (64 MiB/TC)
    return min(phys * 3 // 4, 96 << 20)      # v7x -> 48 MiB, v5e/v6e -> 96 MiB


def _make_net_kernel(f, chunk):
    starts = tuple(range(0, f, chunk))

    def kernel(b_ref, x_ref, w_ref, o_ref):
        # b_ref: (1,) bias in SMEM (scalar prefetch)
        # x_ref: (TB, F) batch tile, streamed in the caller's dtype
        # w_ref: (1, F) f32 weight row (same block every step -> stays resident)
        # o_ref: (1, TB) lane-dense f32 output row tile
        tb = o_ref.shape[1]
        z = jnp.zeros((tb,), jnp.float32)
        # Chunked VPU multiply-accumulate: temporaries bounded at (TB, chunk) f32,
        # every chunk start lane-aligned (multiple of 128).  The per-chunk lane
        # reduce goes to the otherwise-idle XLU; kernel stays DMA-bound.
        for s in starts:
            e = min(s + chunk, f)
            xc = x_ref[:, s:e].astype(jnp.float32)     # native-dtype load, upcast in VMEM
            wc = w_ref[:, s:e]                          # (1, e-s) broadcasts over sublanes
            z = z + jnp.sum(xc * wc, axis=-1)
        z = z + b_ref[0]
        sig = pl.reciprocal(1.0 + jnp.exp(-z), approx=False)   # exact sigmoid (exp on EUP)
        o_ref[0, :] = sig.astype(o_ref.dtype)

    return kernel


def _buffered_spec(shape, index_map, buffers):
    """BlockSpec with explicit pipeline depth; graceful fallback if unsupported."""
    if buffers is None:
        return pl.BlockSpec(shape, index_map)
    try:
        return pl.BlockSpec(shape, index_map, pipeline_mode=pl.Buffered(buffers))
    except TypeError:
        return pl.BlockSpec(shape, index_map)


def net_forward(x, weight, bias):
    """Pallas TPU forward for Net: sigmoid(x @ weight.T + bias).

    x: (B, F) in its native floating dtype (streamed as-is, upcast in-kernel).
    weight: (1, F) or (F,) as in PyTorch nn.Linear(features, 1); bias: (1,) or ().
    Returns (B, 1) float32.
    """
    B, F = x.shape
    w_row = jnp.asarray(weight, jnp.float32).reshape(1, F)
    b = jnp.asarray(bias, jnp.float32).reshape(1)

    itemsize = jnp.dtype(x.dtype).itemsize
    row_bytes = F * itemsize                       # bytes of one streamed x row
    chunk = min(_FEATURE_CHUNK, _round_up(F, 128))
    temp_row_bytes = 2 * min(F, chunk) * 4 + 16    # per-row in-kernel f32 temporaries
    budget = _vmem_budget_bytes()
    fixed_bytes = 2 * F * 4 + (512 << 10)          # weight buffers + pipeline slack

    # --- bytes-based batch-tile selection -------------------------------------
    tb_target = max(8, _TARGET_TILE_BYTES // row_bytes)
    tb_budget = max(8, (budget - fixed_bytes) // (2 * row_bytes + temp_row_bytes))
    tb = min(tb_target, tb_budget)
    if tb >= B:
        tb = _round_up(B, 8)                       # single tile: only sublane alignment
        num_tiles = 1
    else:
        tb = max(128, _round_down(tb, 128))        # multi-tile: lane-dense (1, TB) output
        num_tiles = -(-B // tb)
    b_pad = num_tiles * tb
    # TODO(synk): for extreme F where even TB=128 overruns VMEM, switch to a 2-D
    # (batch-tile x feature-chunk) grid with a VMEM accumulator scratch.

    # Deeper input buffering only when tiles are small and the grid is long.
    x_tile_bytes = tb * row_bytes
    x_buffers = 3 if (num_tiles >= 4 and x_tile_bytes < (1 << 20)) else None

    vmem_need = ((3 if x_buffers else 2) * x_tile_bytes    # x pipeline buffers
                 + 2 * F * 4                               # resident weight row
                 + 2 * tb * 4                              # output row buffers
                 + tb * temp_row_bytes)                    # chunk temporaries
    vmem_limit = int(min(budget, max(vmem_need + (4 << 20), 32 << 20)))

    out_row = pl.pallas_call(
        _make_net_kernel(F, chunk),
        out_shape=jax.ShapeDtypeStruct((1, b_pad), jnp.float32),
        grid_spec=pltpu.PrefetchScalarGridSpec(
            num_scalar_prefetch=1,                                      # bias -> SMEM
            grid=(num_tiles,),
            in_specs=[
                _buffered_spec((tb, F), lambda i, b_sm: (i, 0), x_buffers),  # x tile
                pl.BlockSpec((1, F), lambda i, b_sm: (0, 0)),                # weight row
            ],
            out_specs=pl.BlockSpec((1, tb), lambda i, b_sm: (0, i)),
        ),
        compiler_params=pltpu.CompilerParams(
            dimension_semantics=("parallel",),     # batch tiles independent (megacore)
            vmem_limit_bytes=vmem_limit,
        ),
    )(b, x, w_row)

    return out_row[0, :B].reshape(B, 1)


def _ref_forward(x, weight, bias):
    return jax.nn.sigmoid(x.astype(jnp.float32) @ weight.reshape(1, -1).T.astype(jnp.float32)
                          + bias.astype(jnp.float32))


if __name__ == "__main__":
    key = jax.random.PRNGKey(0)
    kx, kw, kb, kx2, kx3 = jax.random.split(key, 5)

    # --- small f32 case (matches the module's intended use) -------------------
    batch, features = 8, 32
    x = jax.random.normal(kx, (batch, features), dtype=jnp.float32)
    bound = 1.0 / (features ** 0.5)
    weight = jax.random.uniform(kw, (1, features), minval=-bound, maxval=bound,
                                dtype=jnp.float32)
    bias = jax.random.uniform(kb, (1,), minval=-bound, maxval=bound,
                              dtype=jnp.float32)

    out = net_forward(x, weight, bias)
    jax.block_until_ready(out)
    assert out.shape == (batch, 1)
    assert jnp.allclose(out, _ref_forward(x, weight, bias), atol=1e-5, rtol=1e-5)

    # --- multi-tile case: exercises the batch grid + ragged last tile ---------
    b2, f2 = 3000, 2048
    x2 = jax.random.normal(kx2, (b2, f2), dtype=jnp.float32)
    bound2 = 1.0 / (f2 ** 0.5)
    w2 = jax.random.uniform(kw, (1, f2), minval=-bound2, maxval=bound2, dtype=jnp.float32)
    out2 = net_forward(x2, w2, bias)
    jax.block_until_ready(out2)
    assert out2.shape == (b2, 1)
    assert jnp.allclose(out2, _ref_forward(x2, w2, bias), atol=1e-4, rtol=1e-4)

    # --- bf16-streamed input: native-dtype DMA, f32 accumulate in-kernel ------
    b3, f3 = 64, 256
    x3 = jax.random.normal(kx3, (b3, f3), dtype=jnp.float32).astype(jnp.bfloat16)
    bound3 = 1.0 / (f3 ** 0.5)
    w3 = jax.random.uniform(kw, (1, f3), minval=-bound3, maxval=bound3, dtype=jnp.float32)
    out3 = net_forward(x3, w3, bias)
    jax.block_until_ready(out3)
    assert out3.shape == (b3, 1)
    assert jnp.allclose(out3, _ref_forward(x3, w3, bias), atol=1e-4, rtol=1e-4)

    print("KERNEL_OK")
</pallas_src>

<mosaic_0001>
module attributes {stable_mosaic.version = 11 : i64} {
  func.func @kernel(%arg0: i32, %arg1: memref<1xf32, #tpu.memory_space<smem>>, %arg2: memref<8x32xf32, #tpu.memory_space<vmem>>, %arg3: memref<1x32xf32, #tpu.memory_space<vmem>>, %arg4: memref<1x8xf32, #tpu.memory_space<vmem>>) attributes {dimension_semantics = [#tpu.dimension_semantics<parallel>], iteration_bounds = array<i64: 1>, scalar_prefetch = 1 : i64, scratch_operands = 0 : i64, tpu.core_type = #tpu.core_type<tc>, window_params = [{transform_indices = @transform_0, window_bounds = array<i64: 8, 32>}, {pipeline_mode = #tpu.pipeline_mode<synchronous>, transform_indices = @transform_1, window_bounds = array<i64: 1, 32>}, {transform_indices = @transform_2, window_bounds = array<i64: 1, 8>}]} {
    %cst = arith.constant 0.000000e+00 : f32
    %0 = vector.broadcast %cst : f32 to vector<8xf32>
    %c0 = arith.constant 0 : index
    %c0_0 = arith.constant 0 : index
    %1 = vector.load %arg2[%c0, %c0_0] : memref<8x32xf32, #tpu.memory_space<vmem>>, vector<8x32xf32>
    %c0_1 = arith.constant 0 : index
    %c0_2 = arith.constant 0 : index
    %2 = vector.load %arg3[%c0_1, %c0_2] : memref<1x32xf32, #tpu.memory_space<vmem>>, vector<1x32xf32>
    %3 = vector.broadcast %2 : vector<1x32xf32> to vector<8x32xf32>
    %4 = arith.mulf %1, %3 : vector<8x32xf32>
    %cst_3 = arith.constant dense<0.000000e+00> : vector<8xf32>
    %5 = vector.multi_reduction <add>, %4, %cst_3 [1] : vector<8x32xf32> to vector<8xf32>
    %6 = arith.addf %0, %5 : vector<8xf32>
    %c0_4 = arith.constant 0 : index
    %7 = memref.load %arg1[%c0_4] : memref<1xf32, #tpu.memory_space<smem>>
    %8 = vector.broadcast %7 : f32 to vector<8xf32>
    %9 = arith.addf %6, %8 : vector<8xf32>
    %cst_5 = arith.constant 0.000000e+00 : f32
    %10 = vector.broadcast %cst_5 : f32 to vector<8xf32>
    %11 = arith.subf %10, %9 : vector<8xf32>
    %12 = math.exp %11 : vector<8xf32>
    %cst_6 = arith.constant 1.000000e+00 : f32
    %13 = vector.broadcast %cst_6 : f32 to vector<8xf32>
    %14 = arith.addf %13, %12 : vector<8xf32>
    %15 = tpu.reciprocal %14 : vector<8xf32> -> vector<8xf32>
    %c0_7 = arith.constant 0 : index
    %c0_8 = arith.constant 0 : index
    %16 = vector.load %arg4[%c0_7, %c0_8] : memref<1x8xf32, #tpu.memory_space<vmem>>, vector<1x8xf32>
    %17 = vector.shape_cast %16 : vector<1x8xf32> to vector<8xf32>
    %18 = vector.shape_cast %15 : vector<8xf32> to vector<1x8xf32>
    tpu.vector_store %arg4[%c0_7, %c0_8], %18 {strides = array<i32>} : memref<1x8xf32, #tpu.memory_space<vmem>>, vector<1x8xf32>,
    return
  }
  func.func @transform_0(%arg0: i32, %arg1: memref<1xf32, #tpu.memory_space<smem>>) -> (i32, i32) {
    %c0_i32 = arith.constant 0 : i32
    %c0_i32_0 = arith.constant 0 : i32
    return %arg0, %c0_i32 : i32, i32
  }
  func.func @transform_1(%arg0: i32, %arg1: memref<1xf32, #tpu.memory_space<smem>>) -> (i32, i32) {
    %c0_i32 = arith.constant 0 : i32
    %c0_i32_0 = arith.constant 0 : i32
    %c0_i32_1 = arith.constant 0 : i32
    return %c0_i32, %c0_i32_0 : i32, i32
  }
  func.func @transform_2(%arg0: i32, %arg1: memref<1xf32, #tpu.memory_space<smem>>) -> (i32, i32) {
    %c0_i32 = arith.constant 0 : i32
    %c0_i32_0 = arith.constant 0 : i32
    return %c0_i32, %arg0 : i32, i32
  }
}

</mosaic_0001>

<llo_original>
// kernel: tpu_custom_call.1
$region0: #{tpu_custom_call.1}
  #allocation0 [shape = 'u32[]', space=smem, size = 0x4, offset = 0x4, fixed_abs, tag = 'smem constant byte address 0x4 - core index']
  #allocation1 [shape = 'u32[144,128]{1,0:T(1,128)}', space=vmem, size = 0x12000, scoped, tag = 'internal scratch']
  #allocation2 [shape = 's32[1]{0}', space=sflag, size = 0x4, scoped, tag = 'scoped memory for tpu_custom_call.1']
  #allocation3 [shape = 'f32[1]{0:T(128)S(6)}', space=smem, size = 0x200, scoped, tag = 'prefetched SMEM operand 0']
  %s0 = inlined_call_operand.<no memory space> [shape: f32[1], index: 0, kind: input, shape index: {}]
  %s1 = inlined_call_operand.hbm [shape: f32[8,32], index: 1, kind: input, shape index: {}]
  %s2 = inlined_call_operand.vmem [shape: f32[1,32], index: 2, kind: input, shape index: {}]
  %s3 = inlined_call_operand.hbm [shape: f32[1,8], index: 3, kind: output, shape index: {}]
  %s4 = sld [smem:[#allocation0]]
  $region22: #{tpu_custom_call.1} parent=0
    _
  %s6 = ssub.s32 1, %s4
  %s7 = scalar_select 0, %s6, %s4
  %8 = sst [smem:[#allocation3]] %s0
  $region1: #{tpu_custom_call.1} parent=0
    #allocation4 [shape = 'u8[4096]{0}', space=vmem, size = 0x1000, scoped, tag = 'input window, operand 1, single buffered']
    #allocation5 [shape = 's32[1]{0}', space=sflag, size = 0x4, scoped, tag = 'scoped memory for tpu_custom_call.1']
    #allocation6 [shape = 's32[1]{0}', space=sflag, size = 0x4, scoped, tag = 'scoped memory for tpu_custom_call.1']
    #allocation7 [shape = 'u8[512]{0}', space=vmem, size = 0x400, scoped, tag = 'output window, operand 0, single buffered']
    %9 = vsyncpa [#allocation5], 0
    %10 = vsyncpa [#allocation6], 0
    // Predicated region
    $region2: #{tpu_custom_call.1} parent=1 // pred_check
      _
    $region3: #{tpu_custom_call.1} parent=1 // pred_check_branch
      %12 = sbr.rel (0) target = $region5
    $region4: #{tpu_custom_call.1} parent=1 // pred_region
      %s14 = ssub.s32 128, 128
      %15 = vsyncadd [#allocation5], %s14
      %s17 = sshll.u32 [#allocation4], 4
      %s18 = int_to_ptr.vmem [resolvable:$true] %s17
      %20 = dma.hbm_to_vmem [thread:$0]  %s1, 128, %s18, [#allocation5]
    $region5: #{tpu_custom_call.1} parent=1 // pred_fallthru
      _
    // Predicated region
    $region6: #{tpu_custom_call.1} parent=1 // pred_check
      _
    $region7: #{tpu_custom_call.1} parent=1 // pred_check_branch
      %22 = sbr.rel (0) target = $region9
    $region8: #{tpu_custom_call.1} parent=1 // pred_region
      _
    $region9: #{tpu_custom_call.1} parent=1 // pred_fallthru
      _
    // Predicated region
    $region10: #{tpu_custom_call.1} parent=1 // pred_check
      _
    $region11: #{tpu_custom_call.1} parent=1 // pred_check_branch
      %24 = sbr.rel (0) target = $region13
    $region12: #{tpu_custom_call.1} parent=1 // pred_region
      %25 = dma.done [#allocation5], 128
    $region13: #{tpu_custom_call.1} parent=1 // pred_fallthru
      _
    %v26 = vld [vmem:[#allocation4] sm:$0xff]
    %v27 = vld [vmem:[%s2] sm:$0x1]
    %v29 = vlaneseq
    %v30 = vshrl.u32 %v29, 7
    %v31 = vsub.s32 0, %v30
    %v32 = vrot.slane %v27, %v31
    %v34 = vmul.f32 %v26, %v32
    %vm35 = vcmask 261120
    %v36 = vsel %vm35, %v34, 0.0
    %37 = vadd.xlane.f32.xlu0 %v36
    %v38 = vpop.xlane.xlu0 %37
    %v39 = vadd.f32 %v38, 0.0
    %s40 = sld [smem:[#allocation3]]
    %v41 = vstv %s40
    %v42 = vadd.f32 %v39, %v41
    %v43 = vsub.f32 0.0, %v42
    %v44 = vmul.f32 %v43, 1.442695
    %v45 = vpow.pop %v44
    %v46 = vadd.f32 %v45, 1.0
    %v47 = vrcp.pop %v46
    %v49 = vlaneseq
    %v50 = vand.u32 %v49, 127
    %v51 = vlaneseq
    %v52 = vshrl.u32 %v51, 7
    %v53 = vsub.s32 %v50, %v52
    %v54 = vrot.slane %v47, %v53
    %vm56 = vcmask 57344
    %57 = vst.msk [vmem:[#allocation7] sm:$0x1] %vm56, %v54
    // Predicated region
    $region14: #{tpu_custom_call.1} parent=1 // pred_check
      _
    $region15: #{tpu_custom_call.1} parent=1 // pred_check_branch
      %59 = sbr.rel (0) target = $region17
    $region16: #{tpu_custom_call.1} parent=1 // pred_region
      %s61 = ssub.s32 16, 16
      %62 = vsyncadd [#allocation6], %s61
      %s64 = sshll.u32 [#allocation7], 4
      %s65 = int_to_ptr.vmem [resolvable:$true] %s64
      %67 = dma.vmem_to_hbm [thread:$0]  %s65, 16, %s3, [#allocation6]
    $region17: #{tpu_custom_call.1} parent=1 // pred_fallthru
      _
    // Predicated region
    $region18: #{tpu_custom_call.1} parent=1 // pred_check
      _
    $region19: #{tpu_custom_call.1} parent=1 // pred_check_branch
      %69 = sbr.rel (0) target = $region21
    $region20: #{tpu_custom_call.1} parent=1 // pred_region
      %70 = dma.done [#allocation6], 16
    $region21: #{tpu_custom_call.1} parent=1 // pred_fallthru
      _
    %71 = vsyncpa [#allocation5], 1
    %72 = vsyncpa [#allocation6], 1

</llo_original>
